<compile_context>
chip_gen: v5e
topology: v5e:2x2
jax: 0.10.0
libtpu: 0.0.40
codegen_flags: <defaults>
</compile_context>

<pallas_src>
import jax
import jax.numpy as jnp
from jax.experimental import pallas as pl
from jax.experimental.pallas import tpu as pltpu

# Problem sizes (X_train.shape[1] is unspecified in the reference; pick 32).
BATCH = 8            # multiple of 8 -> full f32 sublanes
IN_FEATURES = 32
HIDDEN = 10          # logical hidden size (PyTorch nn.Linear(F, 10))
HIDDEN_PAD = 128     # lane-dense padded hidden size (one f32 vreg wide)
OUT_FEATURES = 1


def _mlp_kernel(x_ref, w1_ref, b1_ref, w2_ref, b2_ref, o_ref):
    # x: [B, F]  w1: [F, Hp]  b1: [1, Hp]  w2_row: [1, Hp]  b2: [1,1] (SMEM)
    x = x_ref[...]

    # fc1 on the MXU (single pass), bias add + ReLU on the VPU.
    h = jnp.dot(x, w1_ref[...], preferred_element_type=jnp.float32) + b1_ref[...]
    h = jnp.maximum(h, 0.0)                       # ReLU; padded lanes stay 0

    # fc2 as VPU multiply + lane reduction (XLU) — avoids an N=1 MXU pass.
    # Padded lanes of both h and w2_row are exactly zero, so the sum is exact.
    z = jnp.sum(h * w2_ref[...], axis=-1, keepdims=True) + b2_ref[0, 0]

    # sigmoid: exp on the EUP, exact divide on the VPU.
    o_ref[...] = 1.0 / (1.0 + jnp.exp(-z))


def prepare_params(w1, b1, w2, b2):
    """Pad hidden dim 10 -> 128 with zeros and reshape biases (done once,
    outside the kernel / hot path)."""
    H = w1.shape[1]
    w1_p = jnp.zeros((w1.shape[0], HIDDEN_PAD), jnp.float32).at[:, :H].set(w1)
    b1_p = jnp.zeros((1, HIDDEN_PAD), jnp.float32).at[0, :H].set(b1)
    # w2 [H, 1] -> lane-dense row [1, HIDDEN_PAD]
    w2_row = jnp.zeros((1, HIDDEN_PAD), jnp.float32).at[0, :H].set(w2[:, 0])
    b2_2d = b2.reshape(1, 1).astype(jnp.float32)
    return w1_p, b1_p, w2_row, b2_2d


def simple_model_forward(x, w1_p, b1_p, w2_row, b2_2d):
    """x: [B, F] f32; padded params from prepare_params -> [B, 1] f32."""
    B, F = x.shape

    cost = pl.CostEstimate(
        flops=2 * B * F * HIDDEN_PAD + 4 * B * HIDDEN_PAD + 4 * B,
        transcendentals=B,
        bytes_accessed=4 * (x.size + w1_p.size + b1_p.size + w2_row.size
                            + b2_2d.size + B * OUT_FEATURES),
    )

    out = pl.pallas_call(
        _mlp_kernel,
        out_shape=jax.ShapeDtypeStruct((B, OUT_FEATURES), jnp.float32),
        # Grid-less, full-array blocks: no pipeline setup, no index maps.
        in_specs=[
            pl.BlockSpec(memory_space=pltpu.MemorySpace.VMEM),   # x
            pl.BlockSpec(memory_space=pltpu.MemorySpace.VMEM),   # w1 padded
            pl.BlockSpec(memory_space=pltpu.MemorySpace.VMEM),   # b1 padded
            pl.BlockSpec(memory_space=pltpu.MemorySpace.VMEM),   # w2 row
            pl.BlockSpec(memory_space=pltpu.MemorySpace.SMEM),   # b2 scalar
        ],
        out_specs=pl.BlockSpec(memory_space=pltpu.MemorySpace.VMEM),
        cost_estimate=cost,
    )(x, w1_p, b1_p, w2_row, b2_2d)
    return out


def init_params(key):
    """Deterministic init matching nn.Linear shapes (weights pre-transposed)."""
    k1, k2, k3, k4 = jax.random.split(key, 4)
    # PyTorch fc1.weight is [10, F]; we store its transpose [F, 10].
    w1 = jax.random.uniform(k1, (IN_FEATURES, HIDDEN), jnp.float32, -0.1, 0.1)
    b1 = jax.random.uniform(k2, (HIDDEN,), jnp.float32, -0.1, 0.1)
    # PyTorch fc2.weight is [1, 10]; we store its transpose [10, 1].
    w2 = jax.random.uniform(k3, (HIDDEN, OUT_FEATURES), jnp.float32, -0.1, 0.1)
    b2 = jax.random.uniform(k4, (OUT_FEATURES,), jnp.float32, -0.1, 0.1)
    return w1, b1, w2, b2


if __name__ == "__main__":
    key = jax.random.PRNGKey(0)
    kx, kp = jax.random.split(key)
    x = jax.random.normal(kx, (BATCH, IN_FEATURES), jnp.float32)
    w1, b1, w2, b2 = init_params(kp)

    # One-time parameter prep (padding) outside the kernel.
    w1_p, b1_p, w2_row, b2_2d = prepare_params(w1, b1, w2, b2)

    out = simple_model_forward(x, w1_p, b1_p, w2_row, b2_2d)
    out = jax.block_until_ready(out)

    # Sanity check against the pure-JAX reference on the ORIGINAL (unpadded)
    # parameters — padding must not change the result.
    ref = jax.nn.sigmoid(jnp.maximum(x @ w1 + b1, 0.0) @ w2 + b2)
    assert out.shape == (BATCH, OUT_FEATURES)
    assert jnp.allclose(out, ref, atol=1e-5, rtol=1e-5)

    print("KERNEL_OK")
</pallas_src>

<mosaic_0001>
module attributes {stable_mosaic.version = 11 : i64} {
  func.func @_mlp_kernel(%arg0: memref<8x32xf32, #tpu.memory_space<vmem>>, %arg1: memref<32x128xf32, #tpu.memory_space<vmem>>, %arg2: memref<1x128xf32, #tpu.memory_space<vmem>>, %arg3: memref<1x128xf32, #tpu.memory_space<vmem>>, %arg4: memref<1x1xf32, #tpu.memory_space<smem>>, %arg5: memref<8x1xf32, #tpu.memory_space<vmem>>) attributes {dimension_semantics = [], scalar_prefetch = 0 : i64, scratch_operands = 0 : i64, tpu.core_type = #tpu.core_type<tc>} {
    %c0 = arith.constant 0 : index
    %c0_0 = arith.constant 0 : index
    %0 = vector.load %arg0[%c0, %c0_0] : memref<8x32xf32, #tpu.memory_space<vmem>>, vector<8x32xf32>
    %c0_1 = arith.constant 0 : index
    %c0_2 = arith.constant 0 : index
    %1 = vector.load %arg1[%c0_1, %c0_2] : memref<32x128xf32, #tpu.memory_space<vmem>>, vector<32x128xf32>
    %cst = arith.constant dense<0.000000e+00> : vector<8x128xf32>
    %2 = tpu.matmul %0, %1, %cst {dimension_numbers = #tpu.dot_dimension_numbers<[1], [0], [0], [1], [0, 0, 1, 1], [], []>} : vector<8x32xf32>, vector<32x128xf32>, vector<8x128xf32> -> vector<8x128xf32>
    %c0_3 = arith.constant 0 : index
    %c0_4 = arith.constant 0 : index
    %3 = vector.load %arg2[%c0_3, %c0_4] : memref<1x128xf32, #tpu.memory_space<vmem>>, vector<1x128xf32>
    %4 = vector.broadcast %3 : vector<1x128xf32> to vector<8x128xf32>
    %5 = arith.addf %2, %4 : vector<8x128xf32>
    %cst_5 = arith.constant 0.000000e+00 : f32
    %6 = vector.broadcast %cst_5 : f32 to vector<8x128xf32>
    %7 = arith.maximumf %5, %6 : vector<8x128xf32>
    %c0_6 = arith.constant 0 : index
    %c0_7 = arith.constant 0 : index
    %8 = vector.load %arg3[%c0_6, %c0_7] : memref<1x128xf32, #tpu.memory_space<vmem>>, vector<1x128xf32>
    %9 = vector.broadcast %8 : vector<1x128xf32> to vector<8x128xf32>
    %10 = arith.mulf %7, %9 : vector<8x128xf32>
    %cst_8 = arith.constant dense<0.000000e+00> : vector<8xf32>
    %11 = vector.multi_reduction <add>, %10, %cst_8 [1] : vector<8x128xf32> to vector<8xf32>
    %12 = vector.shape_cast %11 : vector<8xf32> to vector<8x1xf32>
    %c0_9 = arith.constant 0 : index
    %c0_10 = arith.constant 0 : index
    %13 = memref.load %arg4[%c0_9, %c0_10] : memref<1x1xf32, #tpu.memory_space<smem>>
    %14 = vector.broadcast %13 : f32 to vector<8x1xf32>
    %15 = arith.addf %12, %14 : vector<8x1xf32>
    %cst_11 = arith.constant 0.000000e+00 : f32
    %16 = vector.broadcast %cst_11 : f32 to vector<8x1xf32>
    %17 = arith.subf %16, %15 : vector<8x1xf32>
    %18 = math.exp %17 : vector<8x1xf32>
    %cst_12 = arith.constant 1.000000e+00 : f32
    %19 = vector.broadcast %cst_12 : f32 to vector<8x1xf32>
    %20 = arith.addf %19, %18 : vector<8x1xf32>
    %cst_13 = arith.constant 1.000000e+00 : f32
    %21 = vector.broadcast %cst_13 : f32 to vector<8x1xf32>
    %22 = arith.divf %21, %20 : vector<8x1xf32>
    %c0_14 = arith.constant 0 : index
    %c0_15 = arith.constant 0 : index
    %23 = vector.load %arg5[%c0_14, %c0_15] : memref<8x1xf32, #tpu.memory_space<vmem>>, vector<8x1xf32>
    tpu.vector_store %arg5[%c0_14, %c0_15], %22 {strides = array<i32>} : memref<8x1xf32, #tpu.memory_space<vmem>>, vector<8x1xf32>,
    return
  }
}

</mosaic_0001>

<llo_original>
// kernel: tpu_custom_call.1
$region0: #{tpu_custom_call.1}
  #allocation0 [shape = 'u32[]', space=smem, size = 0x4, offset = 0x4, fixed_abs, tag = 'smem constant byte address 0x4 - core index']
  #allocation1 [shape = 'u32[72,128]{1,0:T(1,128)}', space=vmem, size = 0x9000, scoped, tag = 'internal scratch']
  #allocation2 [shape = 'f32[1,1]{1,0:T(1,128)S(6)}', space=smem, size = 0x200, scoped, tag = 'scoped memory for tpu_custom_call.1']
  %s0 = inlined_call_operand.hbm [shape: f32[8,32], index: 0, kind: input, shape index: {}]
  %s1 = inlined_call_operand.hbm [shape: f32[32,128], index: 1, kind: input, shape index: {}]
  %s2 = inlined_call_operand.vmem [shape: f32[1,128], index: 2, kind: input, shape index: {}]
  %s3 = inlined_call_operand.vmem [shape: f32[1,128], index: 3, kind: input, shape index: {}]
  %s4 = inlined_call_operand.<no memory space> [shape: f32[1,1], index: 4, kind: input, shape index: {}]
  %s5 = inlined_call_operand.vmem [shape: f32[8,1], index: 5, kind: output, shape index: {}]
  %s6 = sld [smem:[#allocation0]]
  $region38: #{tpu_custom_call.1} parent=0
    _
  %s8 = ssub.s32 1, %s6
  %s9 = scalar_select 0, %s8, %s6
  %10 = sst [smem:[#allocation2]] %s4
  $region1: #{tpu_custom_call.1} parent=0
    #allocation3 [shape = 'u8[4096]{0}', space=vmem, size = 0x1000, scoped, tag = 'input window, operand 0, single buffered']
    #allocation4 [shape = 's32[1]{0}', space=sflag, size = 0x4, scoped, tag = 'scoped memory for tpu_custom_call.1']
    #allocation5 [shape = 'u8[16384]{0}', space=vmem, size = 0x4000, scoped, tag = 'input window, operand 1, single buffered']
    #allocation6 [shape = 's32[1]{0}', space=sflag, size = 0x4, scoped, tag = 'scoped memory for tpu_custom_call.1']
    %11 = vsyncpa [#allocation4], 0
    %12 = vsyncpa [#allocation6], 0
    // Predicated region
    $region2: #{tpu_custom_call.1} parent=1 // pred_check
      _
    $region3: #{tpu_custom_call.1} parent=1 // pred_check_branch
      %14 = sbr.rel (0) target = $region5
    $region4: #{tpu_custom_call.1} parent=1 // pred_region
      %16 = vsyncadd [#allocation4], 0
      %s18 = sshll.u32 %s0, 4
      %s19 = int_to_ptr.hbm [resolvable:$true] %s18
      %s20 = sshll.u32 [#allocation3], 4
      %s21 = int_to_ptr.vmem [resolvable:$true] %s20
      %23 = dma.hbm_to_vmem [thread:$0]  %s19, 128, %s21, [#allocation4]
    $region5: #{tpu_custom_call.1} parent=1 // pred_fallthru
      _
    // Predicated region
    $region6: #{tpu_custom_call.1} parent=1 // pred_check
      _
    $region7: #{tpu_custom_call.1} parent=1 // pred_check_branch
      %25 = sbr.rel (0) target = $region9
    $region8: #{tpu_custom_call.1} parent=1 // pred_region
      %27 = vsyncadd [#allocation6], 0
      %s28 = sshll.u32 %s1, 4
      %s29 = int_to_ptr.hbm [resolvable:$true] %s28
      %s30 = sshll.u32 [#allocation5], 4
      %s31 = int_to_ptr.vmem [resolvable:$true] %s30
      %36 = dma.hbm_to_vmem [thread:$0]  %s29, 512, %s31, [#allocation6], 128, 128, 8
    $region9: #{tpu_custom_call.1} parent=1 // pred_fallthru
      _
    // Predicated region
    $region10: #{tpu_custom_call.1} parent=1 // pred_check
      _
    $region11: #{tpu_custom_call.1} parent=1 // pred_check_branch
      %38 = sbr.rel (0) target = $region13
    $region12: #{tpu_custom_call.1} parent=1 // pred_region
      _
    $region13: #{tpu_custom_call.1} parent=1 // pred_fallthru
      _
    // Predicated region
    $region14: #{tpu_custom_call.1} parent=1 // pred_check
      _
    $region15: #{tpu_custom_call.1} parent=1 // pred_check_branch
      %40 = sbr.rel (0) target = $region17
    $region16: #{tpu_custom_call.1} parent=1 // pred_region
      _
    $region17: #{tpu_custom_call.1} parent=1 // pred_fallthru
      _
    // Predicated region
    $region18: #{tpu_custom_call.1} parent=1 // pred_check
      _
    $region19: #{tpu_custom_call.1} parent=1 // pred_check_branch
      %42 = sbr.rel (0) target = $region21
    $region20: #{tpu_custom_call.1} parent=1 // pred_region
      _
    $region21: #{tpu_custom_call.1} parent=1 // pred_fallthru
      _
    // Predicated region
    $region22: #{tpu_custom_call.1} parent=1 // pred_check
      _
    $region23: #{tpu_custom_call.1} parent=1 // pred_check_branch
      %44 = sbr.rel (0) target = $region25
    $region24: #{tpu_custom_call.1} parent=1 // pred_region
      %46 = dma.done [#allocation4], 128
    $region25: #{tpu_custom_call.1} parent=1 // pred_fallthru
      _
    // Predicated region
    $region26: #{tpu_custom_call.1} parent=1 // pred_check
      _
    $region27: #{tpu_custom_call.1} parent=1 // pred_check_branch
      %48 = sbr.rel (0) target = $region29
    $region28: #{tpu_custom_call.1} parent=1 // pred_region
      %50 = dma.done [#allocation6], 512
    $region29: #{tpu_custom_call.1} parent=1 // pred_fallthru
      _
    %v51 = vld [vmem:[#allocation3] sm:$0xff]
    %v52 = vld [vmem:[#allocation5] sm:$0xff]
    %v53 = vld [vmem:[#allocation5 + $0x8] sm:$0xff]
    %v54 = vld [vmem:[#allocation5 + $0x10] sm:$0xff]
    %v55 = vld [vmem:[#allocation5 + $0x18] sm:$0xff]
    %v56 = vld [vmem:[%s2] sm:$0x1]
    %v58 = vperm.slane %v56, 0
    %vm60 = vcmask 261120
    %v62 = vsel %vm60, %v51, 0
    %64 = vmatpush.msra.mxu0 0.0
    %65 = vmatpush.msra.mxu0 0.0
    %66 = vmatpush.msra.mxu0 0.0
    %67 = vmatpush.msra.mxu0 0.0
    %68 = vmatpush.msra.mxu0 0.0
    %69 = vmatpush.msra.mxu0 0.0
    %70 = vmatpush.msra.mxu0 0.0
    %71 = vmatpush.msra.mxu0 0.0
    %72 = vmatpush.msra.mxu0 0.0
    %73 = vmatpush.msra.mxu0 0.0
    %74 = vmatpush.msra.mxu0 0.0
    %75 = vmatpush.msra.mxu0 0.0
    %76 = vmatpush.msra.mxu0 %v55
    %77 = vmatpush.msra.mxu0 %v54
    %78 = vmatpush.msra.mxu0 %v53
    %79 = vmatpush.msra.mxu0 %v52
    %80 = vmatmul.f32.gmra.mxu0 %v62
    %v81 = vpop.f32.mrf.mxu0
    %v82 = vadd.f32 %v58, %v81
    %83 = vdwg.mxu0
    %v84 = vmax.f32 %v82, 0.0
    %v85 = vld [vmem:[%s3] sm:$0x1]
    %v87 = vperm.slane %v85, 0
    %v89 = vmul.f32 %v84, %v87
    %90 = vadd.xlane.f32.xlu0 %v89
    %v91 = vpop.xlane.xlu0 %90
    %s92 = sld [smem:[#allocation2]]
    %v93 = vstv %s92
    %v94 = vadd.f32 %v91, %v93
    %v95 = vsub.f32 0.0, %v94
    %v96 = vmul.f32 %v95, 1.442695
    %v97 = vpow.pop %v96
    %v98 = vadd.f32 %v97, 1.0
    %v99 = vrcp.pop %v98
    %v100 = vmul.f32 %v98, %v99
    %v101 = vsub.f32 1.0, %v100
    %v102 = vmul.f32 %v99, %v101
    %v103 = vadd.f32 %v99, %v102
    %vm104 = vweird.f32 %v98
    %vm105 = vweird.f32 %v99
    %vm106 = vmor %vm104, %vm105
    %v107 = vsel %vm106, %v99, %v103
    %v108 = vand.u32 2147483647, %v98
    %vm109 = vcmp.eq.f32.partialorder %v108, 8.507059e+37
    %v110 = vand.u32 %v98, 2147483648
    %v111 = vor.u32 1.1754944e-38, %v110
    %v112 = vsel %vm109, %v111, %v107
    %v113 = vmul.f32 1.0, %v112
    %vm114 = vcmask 7168
    %115 = vst.msk [vmem:[%s5] sm:$0xff] %vm114, %v113
    // Predicated region
    $region30: #{tpu_custom_call.1} parent=1 // pred_check
      _
    $region31: #{tpu_custom_call.1} parent=1 // pred_check_branch
      %117 = sbr.rel (0) target = $region33
    $region32: #{tpu_custom_call.1} parent=1 // pred_region
      _
    $region33: #{tpu_custom_call.1} parent=1 // pred_fallthru
      _
    // Predicated region
    $region34: #{tpu_custom_call.1} parent=1 // pred_check
      _
    $region35: #{tpu_custom_call.1} parent=1 // pred_check_branch
      %119 = sbr.rel (0) target = $region37
    $region36: #{tpu_custom_call.1} parent=1 // pred_region
      _
    $region37: #{tpu_custom_call.1} parent=1 // pred_fallthru
      _
    %120 = vsyncpa [#allocation4], 1
    %121 = vsyncpa [#allocation6], 1

</llo_original>
